<compile_context>
chip_gen: v6e
topology: v6e:2x2x1
jax: 0.10.0
libtpu: 0.0.40
codegen_flags: <defaults>
</compile_context>

<pallas_src>
import functools

import numpy as np
import jax
import jax.numpy as jnp
from jax.experimental import pallas as pl
from jax.experimental.pallas import tpu as pltpu

_EPSILON = 1e-4


# --------------------------------------------------------------------------
# Host-side (numpy) construction of the bilinear interpolation matrices.
# --------------------------------------------------------------------------
def _interp_matrix_np(out_size: int, in_size: int) -> np.ndarray:
    """Row/col bilinear matrix matching F.interpolate(mode='bilinear',
    align_corners=False). Built with numpy -> baked compile-time constant."""
    if out_size == in_size:
        return np.eye(in_size, dtype=np.float32)
    scale = in_size / out_size
    o = np.arange(out_size, dtype=np.float64)
    src = np.maximum((o + 0.5) * scale - 0.5, 0.0)       # PyTorch clamps < 0
    i0 = np.clip(np.floor(src).astype(np.int64), 0, in_size - 1)
    i1 = np.minimum(i0 + 1, in_size - 1)
    l1 = src - i0
    l0 = 1.0 - l1
    m = np.zeros((out_size, in_size), dtype=np.float64)
    rows = np.arange(out_size)
    np.add.at(m, (rows, i0), l0)
    np.add.at(m, (rows, i1), l1)
    return m.astype(np.float32)


@functools.lru_cache(maxsize=1)
def _vmem_budget_bytes() -> int:
    """Half the physical VMEM of the local TPU generation (review item 3)."""
    try:
        cap = int(pltpu.get_tpu_info().vmem_capacity_bytes)
    except Exception:
        cap = 128 * 1024 * 1024          # v5e/v6e physical; conservative default
    return cap // 2


def _pick_c_tile(c, max_h, footprint, budget, cap=256):
    """Largest divisor of C that is layout-legal and fits the VMEM budget."""
    divisors = [d for d in range(c, 0, -1) if c % d == 0]
    # Block last-two dims must be divisible by (8, .) unless they span the
    # full array dim, so require (c_tile * max_h) % 8 == 0 when tiling C.
    legal = [d for d in divisors if d == c or (d * max_h) % 8 == 0]
    for d in legal:
        if d <= cap and footprint(d) <= budget:
            return d
    return legal[-1]


# --------------------------------------------------------------------------
# Kernel
# --------------------------------------------------------------------------
def _build_kernel(num_inputs, needs_resize, max_h, op_dtype, out_dtype):
    """refs layout: (w_smem, x_0..x_{n-1}, [ah_i, awT_i for resized i], out)."""

    def kernel(w_ref, *refs):
        out_ref = refs[-1]
        x_refs = refs[:num_inputs]
        op_refs = refs[num_inputs:-1]

        # BiFPN weight relu + normalization on the scalar unit (review item 8).
        w = [jnp.maximum(w_ref[i], 0.0) for i in range(num_inputs)]
        total = w[0]
        for wi in w[1:]:
            total = total + wi
        inv = 1.0 / (total + _EPSILON)

        op_i = 0
        for i in range(num_inputs):
            if needs_resize[i]:
                ah_ref, awt_ref = op_refs[op_i], op_refs[op_i + 1]
                op_i += 2
                xb = x_refs[i][0]                              # (Ct, h, w)
                ct, h, wdim = xb.shape
                # Pass 1 (H): channel-batched (max_h, h) @ (h, w) on the MXU.
                ah_b = jnp.broadcast_to(ah_ref[...], (ct, max_h, h))
                u = jnp.einsum("cHk,ckl->cHl", ah_b, xb,
                               preferred_element_type=jnp.float32)
                u = u.astype(op_dtype)                         # bf16 MXU feed
                # Pass 2 (W): one rank-2 matmul, M = Ct*max_h (fills the MXU).
                r = jnp.dot(u.reshape(ct * max_h, wdim), awt_ref[...],
                            preferred_element_type=jnp.float32)
            else:
                # Already at (max_h, max_w): pure VPU scale-and-store, no
                # resize matmul at all (review item 1).
                r = x_refs[i][0].astype(jnp.float32)           # (Ct*max_h, max_w)
            out_ref[0, i, :, :] = ((w[i] * inv) * r).astype(out_dtype)

    return kernel


# --------------------------------------------------------------------------
# Wrapper
# --------------------------------------------------------------------------
@functools.partial(jax.jit, static_argnames=("out_dtype", "c_tile"))
def bifpn_concat(x1, x2, raw_w, *, out_dtype=None, c_tile=None):
    """BiFPN_Concat forward (num_inputs=2, dimension=1, use_relu=True)."""
    xs = [x1, x2]
    num_inputs = len(xs)
    n, c = x1.shape[0], x1.shape[1]
    for x in xs:
        assert x.shape[0] == n and x.shape[1] == c, "batch/channel mismatch"
    max_h = max(x.shape[2] for x in xs)
    max_w = max(x.shape[3] for x in xs)

    if out_dtype is None:
        # PyTorch promotion: f32 weight * x. Pass out_dtype=bf16 to halve
        # writeback bytes if the consumer accepts it (review item 9).
        out_dtype = jnp.promote_types(x1.dtype, jnp.float32)
    out_dtype = np.dtype(out_dtype)

    needs_resize = tuple((x.shape[2], x.shape[3]) != (max_h, max_w) for x in xs)
    # bf16 inputs feed the MXU bf16 (operators cast); f32 stays f32 (item 5).
    op_dtype = jnp.bfloat16 if x1.dtype == jnp.bfloat16 else jnp.float32
    op_isz = np.dtype(op_dtype).itemsize

    def footprint(ct_):
        """Per-step VMEM bytes: double-buffered blocks + f32 intermediates."""
        b = 0
        for x, rsz in zip(xs, needs_resize):
            isz = np.dtype(x.dtype).itemsize
            if rsz:
                h, w = x.shape[2], x.shape[3]
                b += 2 * ct_ * h * w * isz                       # x block
                b += 2 * (max_h * h + w * max_w) * op_isz        # operators
                b += ct_ * max_h * (h + w + max_w) * 4           # intermediates
            else:
                b += 2 * ct_ * max_h * max_w * isz
        b += 2 * num_inputs * ct_ * max_h * max_w * out_dtype.itemsize
        return b

    budget = _vmem_budget_bytes()
    if c_tile is None:
        # Largest divisor of C fitting the budget, capped at the 256-wide MXU
        # of v6e/v7x (harmless on v5e — the compiler splits). (items 6/7)
        c_tile = _pick_c_tile(c, max_h, footprint, budget, cap=256)
    assert c % c_tile == 0, "c_tile must divide C"
    n_ct = c // c_tile

    # Footprint-derived limit, never more than half the physical VMEM (item 3).
    vmem_limit = int(min(max(2 * footprint(c_tile) + (4 << 20), 16 << 20), budget))

    # --- assemble inputs / specs -------------------------------------------
    args = [jnp.asarray(raw_w, jnp.float32)]                 # raw weights -> SMEM
    in_specs = [pl.BlockSpec(memory_space=pltpu.MemorySpace.SMEM)]

    x_specs, op_args, op_specs = [], [], []
    for x, rsz in zip(xs, needs_resize):
        h, w = x.shape[2], x.shape[3]
        if rsz:
            args.append(x)                                   # natural (N, C, h, w)
            x_specs.append(pl.BlockSpec((1, c_tile, h, w),
                                        lambda b, ct: (b, ct, 0, 0)))
            ah = jnp.asarray(_interp_matrix_np(max_h, h), op_dtype)      # (maxH, h)
            awt = jnp.asarray(_interp_matrix_np(max_w, w).T, op_dtype)   # (w, maxW)
            op_args += [ah, awt]
            op_specs += [pl.BlockSpec((max_h, h), lambda b, ct: (0, 0)),
                         pl.BlockSpec((w, max_w), lambda b, ct: (0, 0))]
        else:
            # Free metadata view: rows = C*max_h so loads/stores are wide.
            args.append(x.reshape(n, c * max_h, max_w))
            x_specs.append(pl.BlockSpec((1, c_tile * max_h, max_w),
                                        lambda b, ct: (b, ct, 0)))
    args += op_args
    in_specs += x_specs + op_specs

    out_shape = jax.ShapeDtypeStruct((n, num_inputs, c * max_h, max_w), out_dtype)
    out_spec = pl.BlockSpec((1, num_inputs, c_tile * max_h, max_w),
                            lambda b, ct: (b, 0, ct, 0))

    kernel = _build_kernel(num_inputs, needs_resize, max_h, op_dtype, out_dtype)

    out = pl.pallas_call(
        kernel,
        out_shape=out_shape,
        grid_spec=pltpu.PrefetchScalarGridSpec(
            num_scalar_prefetch=0,
            grid=(n, n_ct),
            in_specs=in_specs,
            out_specs=out_spec,
        ),
        compiler_params=pltpu.CompilerParams(
            dimension_semantics=("parallel", "parallel"),
            vmem_limit_bytes=vmem_limit),
    )(*args)

    # (N, num_inputs, C*max_h, max_w) -> (N, num_inputs*C, max_h, max_w): free.
    return out.reshape(n, num_inputs * c, max_h, max_w)


# --------------------------------------------------------------------------
# Plain-JAX reference (same interpolation matrices, true-f32 einsum).
# --------------------------------------------------------------------------
def _reference(xs, raw_w):
    w = jnp.maximum(jnp.asarray(raw_w, jnp.float32), 0.0)
    weight = w / (jnp.sum(w) + _EPSILON)
    max_h = max(x.shape[2] for x in xs)
    max_w = max(x.shape[3] for x in xs)
    outs = []
    for i, x in enumerate(xs):
        ah = jnp.asarray(_interp_matrix_np(max_h, x.shape[2]))
        aw = jnp.asarray(_interp_matrix_np(max_w, x.shape[3]))
        r = jnp.einsum("Hk,nckl,Vl->ncHV", ah, x.astype(jnp.float32), aw,
                       precision="highest")
        outs.append(weight[i] * r)
    return jnp.concatenate(outs, axis=1)


if __name__ == "__main__":
    key = jax.random.PRNGKey(0)
    k1, k2, k3, k4 = jax.random.split(key, 4)
    raw_w = jnp.ones((2,), dtype=jnp.float32)        # nn.Parameter(torch.ones(2))

    # Case 1: mixed resolutions -> identity branch + bilinear 2x upsample.
    x1 = jax.random.normal(k1, (2, 4, 16, 16), dtype=jnp.float32)
    x2 = jax.random.normal(k2, (2, 4, 8, 8), dtype=jnp.float32)
    out = jax.block_until_ready(bifpn_concat(x1, x2, raw_w))
    ref = _reference([x1, x2], raw_w)
    assert out.shape == (2, 8, 16, 16), out.shape
    assert jnp.allclose(out, ref, rtol=1e-5, atol=1e-5), "case 1 mismatch"

    # Case 2: equal resolutions -> pure scale-and-concat (no resize matmuls).
    x3 = jax.random.normal(k3, (2, 4, 16, 16), dtype=jnp.float32)
    out2 = jax.block_until_ready(bifpn_concat(x1, x3, raw_w))
    ref2 = _reference([x1, x3], raw_w)
    assert out2.shape == (2, 8, 16, 16), out2.shape
    assert jnp.allclose(out2, ref2, rtol=1e-5, atol=1e-5), "case 2 mismatch"

    # Case 3: both inputs need resizing (mixed aspect ratios).
    x4 = jax.random.normal(k4, (2, 4, 8, 16), dtype=jnp.float32)
    x5 = jax.random.normal(k1, (2, 4, 16, 8), dtype=jnp.float32)
    out3 = jax.block_until_ready(bifpn_concat(x4, x5, raw_w))
    ref3 = _reference([x4, x5], raw_w)
    assert out3.shape == (2, 8, 16, 16), out3.shape
    assert jnp.allclose(out3, ref3, rtol=1e-5, atol=1e-5), "case 3 mismatch"

    print("KERNEL_OK")
</pallas_src>

<mosaic_0001>
module attributes {stable_mosaic.version = 11 : i64} {
  func.func @kernel(%arg0: i32, %arg1: i32, %arg2: memref<2xf32, #tpu.memory_space<smem>>, %arg3: memref<1x64x16xf32, #tpu.memory_space<vmem>>, %arg4: memref<1x4x8x8xf32, #tpu.memory_space<vmem>>, %arg5: memref<16x8xf32, #tpu.memory_space<vmem>>, %arg6: memref<8x16xf32, #tpu.memory_space<vmem>>, %arg7: memref<1x2x64x16xf32, #tpu.memory_space<vmem>>) attributes {dimension_semantics = [#tpu.dimension_semantics<parallel>, #tpu.dimension_semantics<parallel>], iteration_bounds = array<i64: 2, 1>, scalar_prefetch = 0 : i64, scratch_operands = 0 : i64, tpu.core_type = #tpu.core_type<tc>, window_params = [{transform_indices = @transform_0, window_bounds = array<i64: 2>}, {transform_indices = @transform_1, window_bounds = array<i64: 1, 64, 16>}, {transform_indices = @transform_2, window_bounds = array<i64: 1, 4, 8, 8>}, {pipeline_mode = #tpu.pipeline_mode<synchronous>, transform_indices = @transform_3, window_bounds = array<i64: 16, 8>}, {pipeline_mode = #tpu.pipeline_mode<synchronous>, transform_indices = @transform_4, window_bounds = array<i64: 8, 16>}, {transform_indices = @transform_5, window_bounds = array<i64: 1, 2, 64, 16>}]} {
    %c0 = arith.constant 0 : index
    %0 = memref.load %arg2[%c0] : memref<2xf32, #tpu.memory_space<smem>>
    %cst = arith.constant 0.000000e+00 : f32
    %1 = arith.maximumf %0, %cst : f32
    %c1 = arith.constant 1 : index
    %2 = memref.load %arg2[%c1] : memref<2xf32, #tpu.memory_space<smem>>
    %cst_0 = arith.constant 0.000000e+00 : f32
    %3 = arith.maximumf %2, %cst_0 : f32
    %4 = arith.addf %1, %3 : f32
    %cst_1 = arith.constant 9.99999974E-5 : f32
    %5 = arith.addf %4, %cst_1 : f32
    %cst_2 = arith.constant 1.000000e+00 : f32
    %6 = arith.divf %cst_2, %5 : f32
    %c0_3 = arith.constant 0 : index
    %c0_4 = arith.constant 0 : index
    %c0_5 = arith.constant 0 : index
    %7 = vector.load %arg3[%c0_3, %c0_4, %c0_5] : memref<1x64x16xf32, #tpu.memory_space<vmem>>, vector<1x64x16xf32>
    %8 = vector.shape_cast %7 : vector<1x64x16xf32> to vector<64x16xf32>
    %9 = arith.mulf %1, %6 : f32
    %10 = vector.broadcast %9 : f32 to vector<64x16xf32>
    %11 = arith.mulf %10, %8 : vector<64x16xf32>
    %c0_6 = arith.constant 0 : index
    %c0_7 = arith.constant 0 : index
    %c0_8 = arith.constant 0 : index
    %c0_9 = arith.constant 0 : index
    %12 = vector.load %arg7[%c0_6, %c0_7, %c0_8, %c0_9] : memref<1x2x64x16xf32, #tpu.memory_space<vmem>>, vector<1x1x64x16xf32>
    %13 = vector.shape_cast %12 : vector<1x1x64x16xf32> to vector<64x16xf32>
    %14 = vector.shape_cast %11 : vector<64x16xf32> to vector<1x1x64x16xf32>
    tpu.vector_store %arg7[%c0_6, %c0_7, %c0_8, %c0_9], %14 {strides = array<i32>} : memref<1x2x64x16xf32, #tpu.memory_space<vmem>>, vector<1x1x64x16xf32>,
    %c0_10 = arith.constant 0 : index
    %c0_11 = arith.constant 0 : index
    %c0_12 = arith.constant 0 : index
    %c0_13 = arith.constant 0 : index
    %15 = vector.load %arg4[%c0_10, %c0_11, %c0_12, %c0_13] : memref<1x4x8x8xf32, #tpu.memory_space<vmem>>, vector<1x4x8x8xf32>
    %16 = vector.shape_cast %15 : vector<1x4x8x8xf32> to vector<4x8x8xf32>
    %c0_14 = arith.constant 0 : index
    %c0_15 = arith.constant 0 : index
    %17 = vector.load %arg5[%c0_14, %c0_15] : memref<16x8xf32, #tpu.memory_space<vmem>>, vector<16x8xf32>
    %18 = vector.shape_cast %17 : vector<16x8xf32> to vector<1x16x8xf32>
    %19 = vector.broadcast %18 : vector<1x16x8xf32> to vector<4x16x8xf32>
    "tpu.trace_start"() <{level = 10 : i32, message = "cHk,ckl->cHl"}> : () -> ()
    %cst_16 = arith.constant dense<0.000000e+00> : vector<4x16x8xf32>
    %20 = tpu.matmul %19, %16, %cst_16 {dimension_numbers = #tpu.dot_dimension_numbers<[2], [1], [1], [2], [0, 0, 0, 1, 1, 2], [0], [0]>} : vector<4x16x8xf32>, vector<4x8x8xf32>, vector<4x16x8xf32> -> vector<4x16x8xf32>
    "tpu.trace_stop"() : () -> ()
    %21 = vector.shape_cast %20 : vector<4x16x8xf32> to vector<64x8xf32>
    %c0_17 = arith.constant 0 : index
    %c0_18 = arith.constant 0 : index
    %22 = vector.load %arg6[%c0_17, %c0_18] : memref<8x16xf32, #tpu.memory_space<vmem>>, vector<8x16xf32>
    %cst_19 = arith.constant dense<0.000000e+00> : vector<64x16xf32>
    %23 = tpu.matmul %21, %22, %cst_19 {dimension_numbers = #tpu.dot_dimension_numbers<[1], [0], [0], [1], [0, 0, 1, 1], [], []>} : vector<64x8xf32>, vector<8x16xf32>, vector<64x16xf32> -> vector<64x16xf32>
    %24 = arith.mulf %3, %6 : f32
    %25 = vector.broadcast %24 : f32 to vector<64x16xf32>
    %26 = arith.mulf %25, %23 : vector<64x16xf32>
    %c0_20 = arith.constant 0 : index
    %c1_21 = arith.constant 1 : index
    %c0_22 = arith.constant 0 : index
    %c0_23 = arith.constant 0 : index
    %27 = vector.load %arg7[%c0_20, %c1_21, %c0_22, %c0_23] : memref<1x2x64x16xf32, #tpu.memory_space<vmem>>, vector<1x1x64x16xf32>
    %28 = vector.shape_cast %27 : vector<1x1x64x16xf32> to vector<64x16xf32>
    %29 = vector.shape_cast %26 : vector<64x16xf32> to vector<1x1x64x16xf32>
    tpu.vector_store %arg7[%c0_20, %c1_21, %c0_22, %c0_23], %29 {strides = array<i32>} : memref<1x2x64x16xf32, #tpu.memory_space<vmem>>, vector<1x1x64x16xf32>,
    return
  }
  func.func @transform_0(%arg0: i32, %arg1: i32) -> i32 {
    %c0_i32 = arith.constant 0 : i32
    %c0_i32_0 = arith.constant 0 : i32
    return %c0_i32 : i32
  }
  func.func @transform_1(%arg0: i32, %arg1: i32) -> (i32, i32, i32) {
    %c0_i32 = arith.constant 0 : i32
    %c0_i32_0 = arith.constant 0 : i32
    return %arg0, %arg1, %c0_i32 : i32, i32, i32
  }
  func.func @transform_2(%arg0: i32, %arg1: i32) -> (i32, i32, i32, i32) {
    %c0_i32 = arith.constant 0 : i32
    %c0_i32_0 = arith.constant 0 : i32
    %c0_i32_1 = arith.constant 0 : i32
    return %arg0, %arg1, %c0_i32, %c0_i32_0 : i32, i32, i32, i32
  }
  func.func @transform_3(%arg0: i32, %arg1: i32) -> (i32, i32) {
    %c0_i32 = arith.constant 0 : i32
    %c0_i32_0 = arith.constant 0 : i32
    %c0_i32_1 = arith.constant 0 : i32
    return %c0_i32, %c0_i32_0 : i32, i32
  }
  func.func @transform_4(%arg0: i32, %arg1: i32) -> (i32, i32) {
    %c0_i32 = arith.constant 0 : i32
    %c0_i32_0 = arith.constant 0 : i32
    %c0_i32_1 = arith.constant 0 : i32
    return %c0_i32, %c0_i32_0 : i32, i32
  }
  func.func @transform_5(%arg0: i32, %arg1: i32) -> (i32, i32, i32, i32) {
    %c0_i32 = arith.constant 0 : i32
    %c0_i32_0 = arith.constant 0 : i32
    %c0_i32_1 = arith.constant 0 : i32
    return %arg0, %c0_i32, %arg1, %c0_i32_0 : i32, i32, i32, i32
  }
}

</mosaic_0001>

<llo_original>
// kernel: bifpn_concat.1
$region0: #{bifpn_concat.1}
  #allocation0 [shape = 'u32[]', space=smem, size = 0x4, offset = 0x4, fixed_abs, tag = 'smem constant byte address 0x4 - core index']
  #allocation1 [shape = 'u32[144,128]{1,0:T(1,128)}', space=vmem, size = 0x12000, scoped, tag = 'internal scratch']
  %s0 = inlined_call_operand.vmem [shape: f32[2], index: 0, kind: input, shape index: {}]
  %s1 = inlined_call_operand.hbm [shape: f32[2,64,16], index: 1, kind: input, shape index: {}]
  %s2 = inlined_call_operand.hbm [shape: f32[2,4,8,8], index: 2, kind: input, shape index: {}]
  %s3 = inlined_call_operand.hbm [shape: f32[16,8], index: 3, kind: input, shape index: {}]
  %s4 = inlined_call_operand.vmem [shape: f32[8,16], index: 4, kind: input, shape index: {}]
  %s5 = inlined_call_operand.hbm [shape: f32[2,2,64,16], index: 5, kind: output, shape index: {}]
  %s6 = sld [smem:[#allocation0]]
  $region69: #{bifpn_concat.1} parent=0
    _
  %s8 = ssub.s32 1, %s6
  %s9 = scalar_select 0, %s8, %s6
  $region1: #{bifpn_concat.1} parent=0
    #allocation2 [shape = 'u8[512]{0}', space=smem, size = 0x200, scoped, tag = 'input window, operand 0, single buffered']
    #allocation3 [shape = 's32[2]{0}', space=sflag, size = 0x8, scoped, tag = 'scoped memory for bifpn_concat.1']
    #allocation4 [shape = 's32[2]{0}', space=sflag, size = 0x8, scoped, tag = 'scoped memory for bifpn_concat.1']
    #allocation5 [shape = 's32[2]{0}', space=sflag, size = 0x8, scoped, tag = 'scoped memory for bifpn_concat.1']
    #allocation6 [shape = 'u8[65536]{0}', space=vmem, size = 0x10000, scoped, tag = 'input window, operand 1']
    #allocation7 [shape = 'u8[32768]{0}', space=vmem, size = 0x8000, scoped, tag = 'input window, operand 2']
    #allocation8 [shape = 's32[2]{0}', space=sflag, size = 0x8, scoped, tag = 'scoped memory for bifpn_concat.1']
    #allocation9 [shape = 'u8[8192]{0}', space=vmem, size = 0x2000, scoped, tag = 'input window, operand 3, single buffered']
    #allocation10 [shape = 'u8[131072]{0}', space=vmem, size = 0x20000, scoped, tag = 'output window, operand 0']
    %10 = vsyncpa [#allocation5], 0
    %11 = vsyncpa [#allocation3], 0
    %s12 = scalar_lea.sflag [#allocation3], 1
    %13 = vsyncpa %s12, 0
    %14 = vsyncpa [#allocation8], 0
    %s15 = scalar_lea.sflag [#allocation8], 1
    %16 = vsyncpa %s15, 0
    %17 = vsyncpa [#allocation4], 0
    %s18 = scalar_lea.sflag [#allocation4], 1
    %19 = vsyncpa %s18, 0
    loop: start=0, step=1, limit=4
    $region2: #{bifpn_concat.1} parent=1 // loop_pre_header
      _
    $region3: #{bifpn_concat.1} parent=1 // loop_header
      %s21 = sphi 0, %s25
      %p22 = scmp.ge.s32.totalorder %s21, 4
      %s28 = sphi 0, %s40
      %s29 = sphi 0, %s36
      %s30 = sphi 0, %s28
      %s31 = sphi 0, %s29
      %s32 = sphi 0, %s30
      %s33 = sphi 0, %s31
      %s41 = sphi 0, %s41
      %s43 = sphi 0, %s41
      %s44 = sphi 0, %s43
      %s58 = sphi 0, %s44
      %s66 = sphi 0, %s68
      %s69 = sphi 0, %s66
      %s70 = sphi 0, %s69
      %s86 = sphi 0, %s70
      %s94 = sphi 0, %s96
      %s97 = sphi 0, %s94
      %s98 = sphi 0, %s97
      %s114 = sphi 0, %s98
      %s118 = sphi 0, %s118
      %s120 = sphi 0, %s118
      %s121 = sphi 0, %s120
      %s135 = sphi 0, %s121
      %s139 = sphi 0, %s139
      %s141 = sphi 0, %s139
      %s142 = sphi 0, %s141
      %s156 = sphi 0, %s142
      %s164 = sphi 0, %s166
      %s167 = sphi 0, %s164
      %s168 = sphi 0, %s167
      %s184 = sphi 0, %s168
    $region4: #{bifpn_concat.1} parent=1 // loop_header_branch
      %24 = sbr.rel (%p22) target = $region8
    $region5: #{bifpn_concat.1} parent=1 // loop_body
      %s26 = ssub.s32 %s21, 1
      %s27 = ssub.s32 %s21, 2
      %s34 = sadd.s32 1, %s29
      %p35 = scmp.ge.s32.totalorder %s34, 1
      %s36 = scalar_select %p35, 0, %s34
      %s37 = sadd.s32 1, %s28
      %s38 = scalar_select %p35, %s37, %s28
      %p39 = scmp.ge.s32.totalorder %s38, 2
      %s40 = scalar_select %p39, 0, %s38
      %s42 = sadd.s32 %s41, 1
      %p45 = scmp.eq.s32.totalorder %s21, 1
      %p46 = scmp.ne.s32.totalorder %s41, %s43
      %p47 = scmp.eq.s32.totalorder %s21, 0
      %p48 = por %p46, %p47
      %p49 = scmp.ne.s32.totalorder %s41, %s43
      %p50 = scmp.eq.s32.totalorder %s26, 1
      %p51 = por %p49, %p50
      %p52 = scmp.ne.s32.totalorder %s43, %s44
      %p53 = scmp.eq.s32.totalorder %s26, 0
      %p54 = por %p52, %p53
      %p55 = scmp.ne.s32.totalorder %s43, %s44
      %p56 = scmp.eq.s32.totalorder %s27, 1
      %p57 = por %p55, %p56
      %p59 = scmp.ne.s32.totalorder %s44, %s58
      %p60 = scmp.eq.s32.totalorder %s27, 0
      %p61 = por %p59, %p60
      %s62 = ssub.s32 %s28, %s40
      %s63 = ssub.s32 %s29, %s36
      %s64 = sor.u32 %s62, %s63
      %p65 = scmp.eq.s32.totalorder %s64, 0
      %s67 = sadd.s32 %s66, 1
      %s68 = scalar_select %p65, %s66, %s67
      %p71 = pneg %p65
      %p72 = scmp.eq.s32.totalorder %s21, 1
      %p73 = por %p71, %p72
      %p74 = scmp.ne.s32.totalorder %s66, %s69
      %p75 = scmp.eq.s32.totalorder %s21, 0
      %p76 = por %p74, %p75
      %p77 = scmp.ne.s32.totalorder %s66, %s69
      %p78 = scmp.eq.s32.totalorder %s26, 1
      %p79 = por %p77, %p78
      %p80 = scmp.ne.s32.totalorder %s69, %s70
      %p81 = scmp.eq.s32.totalorder %s26, 0
      %p82 = por %p80, %p81
      %p83 = scmp.ne.s32.totalorder %s69, %s70
      %p84 = scmp.eq.s32.totalorder %s27, 1
      %p85 = por %p83, %p84
      %p87 = scmp.ne.s32.totalorder %s70, %s86
      %p88 = scmp.eq.s32.totalorder %s27, 0
      %p89 = por %p87, %p88
      %s90 = ssub.s32 %s28, %s40
      %s91 = ssub.s32 %s29, %s36
      %s92 = sor.u32 %s90, %s91
      %p93 = scmp.eq.s32.totalorder %s92, 0
      %s95 = sadd.s32 %s94, 1
      %s96 = scalar_select %p93, %s94, %s95
      %p99 = pneg %p93
      %p100 = scmp.eq.s32.totalorder %s21, 1
      %p101 = por %p99, %p100
      %p102 = scmp.ne.s32.totalorder %s94, %s97
      %p103 = scmp.eq.s32.totalorder %s21, 0
      %p104 = por %p102, %p103
      %p105 = scmp.ne.s32.totalorder %s94, %s97
      %p106 = scmp.eq.s32.totalorder %s26, 1
      %p107 = por %p105, %p106
      %p108 = scmp.ne.s32.totalorder %s97, %s98
      %p109 = scmp.eq.s32.totalorder %s26, 0
      %p110 = por %p108, %p109
      %p111 = scmp.ne.s32.totalorder %s97, %s98
      %p112 = scmp.eq.s32.totalorder %s27, 1
      %p113 = por %p111, %p112
      %p115 = scmp.ne.s32.totalorder %s98, %s114
      %p116 = scmp.eq.s32.totalorder %s27, 0
      %p117 = por %p115, %p116
      %s119 = sadd.s32 %s118, 1
      %p122 = scmp.eq.s32.totalorder %s21, 1
      %p123 = scmp.ne.s32.totalorder %s118, %s120
      %p124 = scmp.eq.s32.totalorder %s21, 0
      %p125 = por %p123, %p124
      %p126 = scmp.ne.s32.totalorder %s118, %s120
      %p127 = scmp.eq.s32.totalorder %s26, 1
      %p128 = por %p126, %p127
      %p129 = scmp.ne.s32.totalorder %s120, %s121
      %p130 = scmp.eq.s32.totalorder %s26, 0
      %p131 = por %p129, %p130
      %p132 = scmp.ne.s32.totalorder %s120, %s121
      %p133 = scmp.eq.s32.totalorder %s27, 1
      %p134 = por %p132, %p133
      %p136 = scmp.ne.s32.totalorder %s121, %s135
      %p137 = scmp.eq.s32.totalorder %s27, 0
      %p138 = por %p136, %p137
      %s140 = sadd.s32 %s139, 1
      %p143 = scmp.eq.s32.totalorder %s21, 1
      %p144 = scmp.ne.s32.totalorder %s139, %s141
      %p145 = scmp.eq.s32.totalorder %s21, 0
      %p146 = por %p144, %p145
      %p147 = scmp.ne.s32.totalorder %s139, %s141
      %p148 = scmp.eq.s32.totalorder %s26, 1
      %p149 = por %p147, %p148
      %p150 = scmp.ne.s32.totalorder %s141, %s142
      %p151 = scmp.eq.s32.totalorder %s26, 0
      %p152 = por %p150, %p151
      %p153 = scmp.ne.s32.totalorder %s141, %s142
      %p154 = scmp.eq.s32.totalorder %s27, 1
      %p155 = por %p153, %p154
      %p157 = scmp.ne.s32.totalorder %s142, %s156
      %p158 = scmp.eq.s32.totalorder %s27, 0
      %p159 = por %p157, %p158
      %s160 = ssub.s32 %s28, %s40
      %s161 = ssub.s32 %s29, %s36
      %s162 = sor.u32 %s160, %s161
      %p163 = scmp.eq.s32.totalorder %s162, 0
      %s165 = sadd.s32 %s164, 1
      %s166 = scalar_select %p163, %s164, %s165
      %p169 = pneg %p163
      %p170 = scmp.eq.s32.totalorder %s21, 1
      %p171 = por %p169, %p170
      %p172 = scmp.ne.s32.totalorder %s164, %s167
      %p173 = scmp.eq.s32.totalorder %s21, 0
      %p174 = por %p172, %p173
      %p175 = scmp.ne.s32.totalorder %s164, %s167
      %p176 = scmp.eq.s32.totalorder %s26, 1
      %p177 = por %p175, %p176
      %p178 = scmp.ne.s32.totalorder %s167, %s168
      %p179 = scmp.eq.s32.totalorder %s26, 0
      %p180 = por %p178, %p179
      %p181 = scmp.ne.s32.totalorder %s167, %s168
      %p182 = scmp.eq.s32.totalorder %s27, 1
      %p183 = por %p181, %p182
      %p185 = scmp.ne.s32.totalorder %s168, %s184
      %p186 = scmp.eq.s32.totalorder %s27, 0
      %p187 = por %p185, %p186
      %p188 = scmp.le.s32.totalorder 1, %s21
      %p189 = scmp.lt.s32.totalorder %s21, 3
      %p190 = pnand %p188, %p189
      %p191 = pneg %p190
      // Predicated region
      $region9: #{bifpn_concat.1} parent=5 // pred_check
        _
      $region10: #{bifpn_concat.1} parent=5 // pred_check_branch
        %193 = sbr.rel (%p190) target = $region12
      $region11: #{bifpn_concat.1} parent=5 // pred_region
        %s194 = ssub.s32 %s21, 1
        // Predicated region
        $region13: #{bifpn_concat.1} parent=11 // pred_check
          %p195 = pneg %p54
        $region14: #{bifpn_concat.1} parent=11 // pred_check_branch
          %197 = sbr.rel (%p195) target = $region16
        $region15: #{bifpn_concat.1} parent=11 // pred_region
          %s199 = ssub.s32 16, 16
          %200 = vsyncadd [#allocation5], %s199
          %s202 = sshll.u32 %s0, 4
          %s203 = int_to_ptr.vmem [resolvable:$true] %s202
          %205 = dma.vmem_to_smem %s203, 16, [#allocation2], [#allocation5]
        $region16: #{bifpn_concat.1} parent=11 // pred_fallthru
          _
        // Predicated region
        $region17: #{bifpn_concat.1} parent=11 // pred_check
          %p206 = pneg %p131
        $region18: #{bifpn_concat.1} parent=11 // pred_check_branch
          %208 = sbr.rel (%p206) target = $region20
        $region19: #{bifpn_concat.1} parent=11 // pred_region
          %s210 = ssub.s32 256, 256
          %211 = vsyncadd [#allocation8], %s210
          %s212 = sshll.u32 [#allocation9], 4
          %s213 = int_to_ptr.vmem [resolvable:$true] %s212
          %218 = dma.hbm_to_vmem [thread:$0]  %s3, 256, %s213, [#allocation8], 128, 128, 8
        $region20: #{bifpn_concat.1} parent=11 // pred_fallthru
          _
        // Predicated region
        $region21: #{bifpn_concat.1} parent=11 // pred_check
          %p219 = pneg %p152
        $region22: #{bifpn_concat.1} parent=11 // pred_check_branch
          %221 = sbr.rel (%p219) target = $region24
        $region23: #{bifpn_concat.1} parent=11 // pred_region
          _
        $region24: #{bifpn_concat.1} parent=11 // pred_fallthru
          _
      $region12: #{bifpn_concat.1} parent=5 // pred_fallthru
        _
      %p222 = scmp.lt.s32.totalorder %s21, 2
      // Predicated region
      $region25: #{bifpn_concat.1} parent=5 // pred_check
        %p223 = pneg %p222
      $region26: #{bifpn_concat.1} parent=5 // pred_check_branch
        %225 = sbr.rel (%p223) target = $region28
      $region27: #{bifpn_concat.1} parent=5 // pred_region
        // Predicated region
        $region29: #{bifpn_concat.1} parent=27 // pred_check
          %p226 = pneg %p76
        $region30: #{bifpn_concat.1} parent=27 // pred_check_branch
          %228 = sbr.rel (%p226) target = $region32
        $region31: #{bifpn_concat.1} parent=27 // pred_region
          %s229 = sand.u32 %s66, 1
          %s230 = scalar_lea.sflag [#allocation3], %s229
          %s231 = sand.u32 %s66, 1
          %s232 = smul.addr %s231, 64
          %s233 = scalar_lea.vmem [#allocation6], %s232
          %s234 = smul.u32 8, %s29
          %s236 = ssub.s32 1024, 1024
          %237 = vsyncadd %s230, %s236
          %s238 = smul.addr %s28, 8
          %s239 = sadd.s32 %s234, %s238
          %s240 = smul.addr %s239, 128
          %s241 = scalar_lea.hbm %s1, %s240
          %s242 = sshll.u32 %s233, 4
          %s243 = int_to_ptr.vmem [resolvable:$true] %s242
          %248 = dma.hbm_to_vmem [thread:$0]  %s241, 1024, %s243, %s230, 128, 128, 8
        $region32: #{bifpn_concat.1} parent=27 // pred_fallthru
          _
        // Predicated region
        $region33: #{bifpn_concat.1} parent=27 // pred_check
          %p249 = pneg %p104
        $region34: #{bifpn_concat.1} parent=27 // pred_check_branch
          %251 = sbr.rel (%p249) target = $region36
        $region35: #{bifpn_concat.1} parent=27 // pred_region
          %s252 = sand.u32 %s21, 1
          %s253 = scalar_lea.sflag [#allocation8], %s252
          %s254 = sand.u32 %s94, 1
          %s255 = smul.addr %s254, 32
          %s256 = scalar_lea.vmem [#allocation7], %s255
          %s257 = smul.u32 4, %s29
          %s259 = ssub.s32 512, 512
          %260 = vsyncadd %s253, %s259
          %s261 = smul.addr %s28, 4
          %s262 = sadd.s32 %s257, %s261
          %s263 = smul.addr %s262, 128
          %s264 = scalar_lea.hbm %s2, %s263
          %s265 = sshll.u32 %s256, 4
          %s266 = int_to_ptr.vmem [resolvable:$true] %s265
          %271 = dma.hbm_to_vmem [thread:$0]  %s264, 512, %s266, %s253, 128, 128, 8
        $region36: #{bifpn_concat.1} parent=27 // pred_fallthru
          _
      $region28: #{bifpn_concat.1} parent=5 // pred_fallthru
        _
      %p272 = scmp.le.s32.totalorder 1, %s21
      %p273 = scmp.lt.s32.totalorder %s21, 3
      %p274 = pnand %p272, %p273
      %p275 = pneg %p274
      // Predicated region
      $region37: #{bifpn_concat.1} parent=5 // pred_check
        _
      $region38: #{bifpn_concat.1} parent=5 // pred_check_branch
        %277 = sbr.rel (%p274) target = $region40
      $region39: #{bifpn_concat.1} parent=5 // pred_region
        %s278 = ssub.s32 %s21, 1
        // Predicated region
        $region41: #{bifpn_concat.1} parent=39 // pred_check
          %p279 = pneg %p54
        $region42: #{bifpn_concat.1} parent=39 // pred_check_branch
          %281 = sbr.rel (%p279) target = $region44
        $region43: #{bifpn_concat.1} parent=39 // pred_region
          %282 = dma.done [#allocation5], 16
        $region44: #{bifpn_concat.1} parent=39 // pred_fallthru
          _
        %s283 = sand.u32 %s69, 1
        %s284 = scalar_lea.sflag [#allocation3], %s283
        %s285 = sand.u32 %s69, 1
        %s286 = smul.addr %s285, 64
        %s287 = scalar_lea.vmem [#allocation6], %s286
        // Predicated region
        $region45: #{bifpn_concat.1} parent=39 // pred_check
          %p288 = pneg %p82
        $region46: #{bifpn_concat.1} parent=39 // pred_check_branch
          %290 = sbr.rel (%p288) target = $region48
        $region47: #{bifpn_concat.1} parent=39 // pred_region
          %291 = dma.done %s284, 1024
        $region48: #{bifpn_concat.1} parent=39 // pred_fallthru
          _
        %s292 = sand.u32 %s26, 1
        %s293 = scalar_lea.sflag [#allocation8], %s292
        %s294 = sand.u32 %s97, 1
        %s295 = smul.addr %s294, 32
        %s296 = scalar_lea.vmem [#allocation7], %s295
        // Predicated region
        $region49: #{bifpn_concat.1} parent=39 // pred_check
          %p297 = pneg %p110
        $region50: #{bifpn_concat.1} parent=39 // pred_check_branch
          %299 = sbr.rel (%p297) target = $region52
        $region51: #{bifpn_concat.1} parent=39 // pred_region
          %300 = dma.done %s293, 512
        $region52: #{bifpn_concat.1} parent=39 // pred_fallthru
          _
        // Predicated region
        $region53: #{bifpn_concat.1} parent=39 // pred_check
          %p301 = pneg %p131
        $region54: #{bifpn_concat.1} parent=39 // pred_check_branch
          %303 = sbr.rel (%p301) target = $region56
        $region55: #{bifpn_concat.1} parent=39 // pred_region
          %304 = dma.done [#allocation8], 256
        $region56: #{bifpn_concat.1} parent=39 // pred_fallthru
          _
        %305 = sfence
        %p306 = pneg %p54
        %p307 = pneg %p51
        %s308 = sand.u32 %s69, 1
        %s309 = scalar_lea.sflag [#allocation3], %s308
        %s310 = sand.u32 %s69, 1
        %s311 = smul.addr %s310, 64
        %s312 = scalar_lea.vmem [#allocation6], %s311
        %p313 = pneg %p82
        %p314 = pneg %p79
        %s315 = sand.u32 %s26, 1
        %s316 = scalar_lea.sflag [#allocation8], %s315
        %s317 = sand.u32 %s97, 1
        %s318 = smul.addr %s317, 32
        %s319 = scalar_lea.vmem [#allocation7], %s318
        %p320 = pneg %p110
        %p321 = pneg %p107
        %p322 = pneg %p131
        %p323 = pneg %p128
        %p324 = pneg %p152
        %p325 = pneg %p149
        %p326 = pneg %p180
        %p327 = pneg %p177
        %s328 = sand.u32 %s167, 1
        %s329 = scalar_lea.sflag [#allocation4], %s328
        %s330 = sand.u32 %s167, 1
        %s331 = smul.addr %s330, 128
        %s332 = scalar_lea.vmem [#allocation10], %s331
        %s333 = smul.u32 8, %s31
        %s334 = smul.u32 4, %s31
        %s335 = smul.u32 8, %s31
        %s336 = sld [smem:[#allocation2]]
        %s337 = smax.f32 %s336, 0.0
        %s338 = sld [smem:[#allocation2 + $0x1]]
        %s339 = smax.f32 %s338, 0.0
        %s340 = sadd.f32 %s337, %s339
        %s341 = sadd.f32 %s340, 0.0001
        %v342 = vstv %s341
        %v343 = vrcp.pop %v342
        %s344 = vtos %v343
        %v345 = vld [vmem:[%s287] sm:$0xff]
        %v346 = vld [vmem:[%s287 + $0x8] sm:$0xff]
        %v347 = vld [vmem:[%s287 + $0x10] sm:$0xff]
        %v348 = vld [vmem:[%s287 + $0x18] sm:$0xff]
        %v349 = vld [vmem:[%s287 + $0x20] sm:$0xff]
        %v350 = vld [vmem:[%s287 + $0x28] sm:$0xff]
        %v351 = vld [vmem:[%s287 + $0x30] sm:$0xff]
        %v352 = vld [vmem:[%s287 + $0x38] sm:$0xff]
        %s353 = smul.f32 %s337, %s344
        %v354 = vstv %s353
        %v355 = vmul.f32 %v354, %v345
        %v356 = vmul.f32 %v354, %v346
        %v357 = vmul.f32 %v354, %v347
        %v358 = vmul.f32 %v354, %v348
        %v359 = vmul.f32 %v354, %v349
        %v360 = vmul.f32 %v354, %v350
        %v361 = vmul.f32 %v354, %v351
        %v362 = vmul.f32 %v354, %v352
        %vm363 = vcmask 130048
        %364 = vst.msk [vmem:[%s332] sm:$0xff] %vm363, %v355
        %365 = vst.msk [vmem:[%s332 + $0x8] sm:$0xff] %vm363, %v356
        %366 = vst.msk [vmem:[%s332 + $0x10] sm:$0xff] %vm363, %v357
        %367 = vst.msk [vmem:[%s332 + $0x18] sm:$0xff] %vm363, %v358
        %368 = vst.msk [vmem:[%s332 + $0x20] sm:$0xff] %vm363, %v359
        %369 = vst.msk [vmem:[%s332 + $0x28] sm:$0xff] %vm363, %v360
        %370 = vst.msk [vmem:[%s332 + $0x30] sm:$0xff] %vm363, %v361
        %371 = vst.msk [vmem:[%s332 + $0x38] sm:$0xff] %vm363, %v362
        %v372 = vld [vmem:[%s296] sm:$0xff]
        %v373 = vld [vmem:[%s296 + $0x8] sm:$0xff]
        %v374 = vld [vmem:[%s296 + $0x10] sm:$0xff]
        %v375 = vld [vmem:[%s296 + $0x18] sm:$0xff]
        %v376 = vld [vmem:[#allocation9] sm:$0xff]
        %v377 = vld [vmem:[#allocation9 + $0x8] sm:$0xff]
        %vm378 = vcmask 64512
        %v380 = vsel %vm378, %v376, 0
        %v383 = vsel %vm378, %v377, 0
        %385 = vmatprep.subr.mxu0 0.0
        %386 = vmatpush1.msra.mxu0 0.0
        %387 = vmatprep.subr.mxu0 0.0
        %388 = vmatpush1.msra.mxu0 0.0
        %389 = vmatprep.subr.mxu0 0.0
        %390 = vmatpush1.msra.mxu0 0.0
        %391 = vmatprep.subr.mxu0 0.0
        %392 = vmatpush1.msra.mxu0 0.0
        %393 = vmatprep.subr.mxu0 0.0
        %394 = vmatpush1.msra.mxu0 0.0
        %395 = vmatprep.subr.mxu0 0.0
        %396 = vmatpush1.msra.mxu0 0.0
        %397 = vmatprep.subr.mxu0 0.0
        %398 = vmatpush1.msra.mxu0 0.0
        %399 = vmatprep.subr.mxu0 0.0
        %400 = vmatpush1.msra.mxu0 0.0
        %401 = vmatprep.subr.mxu0 0.0
        %402 = vmatpush1.msra.mxu0 0.0
        %403 = vmatprep.subr.mxu0 0.0
        %404 = vmatpush1.msra.mxu0 0.0
        %405 = vmatprep.subr.mxu0 0.0
        %406 = vmatpush1.msra.mxu0 0.0
        %407 = vmatprep.subr.mxu0 0.0
        %408 = vmatpush1.msra.mxu0 0.0
        %409 = vmatprep.subr.mxu0 0.0
        %410 = vmatpush1.msra.mxu0 0.0
        %411 = vmatprep.subr.mxu0 0.0
        %412 = vmatpush1.msra.mxu0 0.0
        %413 = vmatprep.subr.mxu0 0.0
        %414 = vmatpush1.msra.mxu0 0.0
        %415 = vmatprep.subr.mxu0 0.0
        %416 = vmatpush1.msra.mxu0 %v372
        %417 = vmatprep.subr.mxu0 0.0
        %418 = vmatpush2.msra.mxu0 0.0
        %419 = vmatprep.subr.mxu0 0.0
        %420 = vmatpush2.msra.mxu0 0.0
        %421 = vmatprep.subr.mxu0 0.0
        %422 = vmatpush2.msra.mxu0 0.0
        %423 = vmatprep.subr.mxu0 0.0
        %424 = vmatpush2.msra.mxu0 0.0
        %425 = vmatprep.subr.mxu0 0.0
        %426 = vmatpush2.msra.mxu0 0.0
        %427 = vmatprep.subr.mxu0 0.0
        %428 = vmatpush2.msra.mxu0 0.0
        %429 = vmatprep.subr.mxu0 0.0
        %430 = vmatpush2.msra.mxu0 0.0
        %431 = vmatprep.subr.mxu0 0.0
        %432 = vmatpush2.msra.mxu0 0.0
        %433 = vmatprep.subr.mxu0 0.0
        %434 = vmatpush2.msra.mxu0 0.0
        %435 = vmatprep.subr.mxu0 0.0
        %436 = vmatpush2.msra.mxu0 0.0
        %437 = vmatprep.subr.mxu0 0.0
        %438 = vmatpush2.msra.mxu0 0.0
        %439 = vmatprep.subr.mxu0 0.0
        %440 = vmatpush2.msra.mxu0 0.0
        %441 = vmatprep.subr.mxu0 0.0
        %442 = vmatpush2.msra.mxu0 0.0
        %443 = vmatprep.subr.mxu0 0.0
        %444 = vmatpush2.msra.mxu0 0.0
        %445 = vmatprep.subr.mxu0 0.0
        %446 = vmatpush2.msra.mxu0 0.0
        %447 = vmatprep.subr.mxu0 0.0
        %448 = vmatpush2.msra.mxu0 0.0
        %449 = vmatprep.mubr.f32.mxu0 0.0
        %450 = vmatmul.mubr.f32.gmra.mxu0 %v380
        %v451 = vpop.f32.mrf.mxu0
        %v452 = vadd.f32 0.0, %v451
        %v453 = vpop.f32.mrf.mxu0
        %454 = vmatprep.mubr.f32.mxu0 0.0
        %455 = vmatmul.mubr.f32.gmra.mxu0 %v383
        %v456 = vpop.f32.mrf.mxu0
        %v457 = vadd.f32 0.0, %v456
        %v458 = vpop.f32.mrf.mxu0
        %459 = vdwg.mxu0
        %460 = vmatprep.subr.mxu0 0.0
        %461 = vmatpush1.msra.mxu0 0.0
        %462 = vmatprep.subr.mxu0 0.0
        %463 = vmatpush1.msra.mxu0 0.0
        %464 = vmatprep.subr.mxu0 0.0
        %465 = vmatpush1.msra.mxu0 0.0
        %466 = vmatprep.subr.mxu0 0.0
        %467 = vmatpush1.msra.mxu0 0.0
        %468 = vmatprep.subr.mxu0 0.0
        %469 = vmatpush1.msra.mxu0 0.0
        %470 = vmatprep.subr.mxu0 0.0
        %471 = vmatpush1.msra.mxu0 0.0
        %472 = vmatprep.subr.mxu0 0.0
        %473 = vmatpush1.msra.mxu0 0.0
        %474 = vmatprep.subr.mxu0 0.0
        %475 = vmatpush1.msra.mxu0 0.0
        %476 = vmatprep.subr.mxu0 0.0
        %477 = vmatpush1.msra.mxu0 0.0
        %478 = vmatprep.subr.mxu0 0.0
        %479 = vmatpush1.msra.mxu0 0.0
        %480 = vmatprep.subr.mxu0 0.0
        %481 = vmatpush1.msra.mxu0 0.0
        %482 = vmatprep.subr.mxu0 0.0
        %483 = vmatpush1.msra.mxu0 0.0
        %484 = vmatprep.subr.mxu0 0.0
        %485 = vmatpush1.msra.mxu0 0.0
        %486 = vmatprep.subr.mxu0 0.0
        %487 = vmatpush1.msra.mxu0 0.0
        %488 = vmatprep.subr.mxu0 0.0
        %489 = vmatpush1.msra.mxu0 0.0
        %490 = vmatprep.subr.mxu0 0.0
        %491 = vmatpush1.msra.mxu0 %v373
        %492 = vmatprep.subr.mxu0 0.0
        %493 = vmatpush2.msra.mxu0 0.0
        %494 = vmatprep.subr.mxu0 0.0
        %495 = vmatpush2.msra.mxu0 0.0
        %496 = vmatprep.subr.mxu0 0.0
        %497 = vmatpush2.msra.mxu0 0.0
        %498 = vmatprep.subr.mxu0 0.0
        %499 = vmatpush2.msra.mxu0 0.0
        %500 = vmatprep.subr.mxu0 0.0
        %501 = vmatpush2.msra.mxu0 0.0
        %502 = vmatprep.subr.mxu0 0.0
        %503 = vmatpush2.msra.mxu0 0.0
        %504 = vmatprep.subr.mxu0 0.0
        %505 = vmatpush2.msra.mxu0 0.0
        %506 = vmatprep.subr.mxu0 0.0
        %507 = vmatpush2.msra.mxu0 0.0
        %508 = vmatprep.subr.mxu0 0.0
        %509 = vmatpush2.msra.mxu0 0.0
        %510 = vmatprep.subr.mxu0 0.0
        %511 = vmatpush2.msra.mxu0 0.0
        %512 = vmatprep.subr.mxu0 0.0
        %513 = vmatpush2.msra.mxu0 0.0
        %514 = vmatprep.subr.mxu0 0.0
        %515 = vmatpush2.msra.mxu0 0.0
        %516 = vmatprep.subr.mxu0 0.0
        %517 = vmatpush2.msra.mxu0 0.0
        %518 = vmatprep.subr.mxu0 0.0
        %519 = vmatpush2.msra.mxu0 0.0
        %520 = vmatprep.subr.mxu0 0.0
        %521 = vmatpush2.msra.mxu0 0.0
        %522 = vmatprep.subr.mxu0 0.0
        %523 = vmatpush2.msra.mxu0 0.0
        %524 = vmatprep.mubr.f32.mxu0 0.0
        %525 = vmatmul.mubr.f32.gmra.mxu0 %v380
        %v526 = vpop.f32.mrf.mxu0
        %v527 = vadd.f32 0.0, %v526
        %v528 = vpop.f32.mrf.mxu0
        %529 = vmatprep.mubr.f32.mxu0 0.0
        %530 = vmatmul.mubr.f32.gmra.mxu0 %v383
        %v531 = vpop.f32.mrf.mxu0
        %v532 = vadd.f32 0.0, %v531
        %v533 = vpop.f32.mrf.mxu0
        %534 = vdwg.mxu0
        %535 = vmatprep.subr.mxu0 0.0
        %536 = vmatpush1.msra.mxu0 0.0
        %537 = vmatprep.subr.mxu0 0.0
        %538 = vmatpush1.msra.mxu0 0.0
        %539 = vmatprep.subr.mxu0 0.0
        %540 = vmatpush1.msra.mxu0 0.0
        %541 = vmatprep.subr.mxu0 0.0
        %542 = vmatpush1.msra.mxu0 0.0
        %543 = vmatprep.subr.mxu0 0.0
        %544 = vmatpush1.msra.mxu0 0.0
        %545 = vmatprep.subr.mxu0 0.0
        %546 = vmatpush1.msra.mxu0 0.0
        %547 = vmatprep.subr.mxu0 0.0
        %548 = vmatpush1.msra.mxu0 0.0
        %549 = vmatprep.subr.mxu0 0.0
        %550 = vmatpush1.msra.mxu0 0.0
        %551 = vmatprep.subr.mxu0 0.0
        %552 = vmatpush1.msra.mxu0 0.0
        %553 = vmatprep.subr.mxu0 0.0
        %554 = vmatpush1.msra.mxu0 0.0
        %555 = vmatprep.subr.mxu0 0.0
        %556 = vmatpush1.msra.mxu0 0.0
        %557 = vmatprep.subr.mxu0 0.0
        %558 = vmatpush1.msra.mxu0 0.0
        %559 = vmatprep.subr.mxu0 0.0
        %560 = vmatpush1.msra.mxu0 0.0
        %561 = vmatprep.subr.mxu0 0.0
        %562 = vmatpush1.msra.mxu0 0.0
        %563 = vmatprep.subr.mxu0 0.0
        %564 = vmatpush1.msra.mxu0 0.0
        %565 = vmatprep.subr.mxu0 0.0
        %566 = vmatpush1.msra.mxu0 %v374
        %567 = vmatprep.subr.mxu0 0.0
        %568 = vmatpush2.msra.mxu0 0.0
        %569 = vmatprep.subr.mxu0 0.0
        %570 = vmatpush2.msra.mxu0 0.0
        %571 = vmatprep.subr.mxu0 0.0
        %572 = vmatpush2.msra.mxu0 0.0
        %573 = vmatprep.subr.mxu0 0.0
        %574 = vmatpush2.msra.mxu0 0.0
        %575 = vmatprep.subr.mxu0 0.0
        %576 = vmatpush2.msra.mxu0 0.0
        %577 = vmatprep.subr.mxu0 0.0
        %578 = vmatpush2.msra.mxu0 0.0
        %579 = vmatprep.subr.mxu0 0.0
        %580 = vmatpush2.msra.mxu0 0.0
        %581 = vmatprep.subr.mxu0 0.0
        %582 = vmatpush2.msra.mxu0 0.0
        %583 = vmatprep.subr.mxu0 0.0
        %584 = vmatpush2.msra.mxu0 0.0
        %585 = vmatprep.subr.mxu0 0.0
        %586 = vmatpush2.msra.mxu0 0.0
        %587 = vmatprep.subr.mxu0 0.0
        %588 = vmatpush2.msra.mxu0 0.0
        %589 = vmatprep.subr.mxu0 0.0
        %590 = vmatpush2.msra.mxu0 0.0
        %591 = vmatprep.subr.mxu0 0.0
        %592 = vmatpush2.msra.mxu0 0.0
        %593 = vmatprep.subr.mxu0 0.0
        %594 = vmatpush2.msra.mxu0 0.0
        %595 = vmatprep.subr.mxu0 0.0
        %596 = vmatpush2.msra.mxu0 0.0
        %597 = vmatprep.subr.mxu0 0.0
        %598 = vmatpush2.msra.mxu0 0.0
        %599 = vmatprep.mubr.f32.mxu0 0.0
        %600 = vmatmul.mubr.f32.gmra.mxu0 %v380
        %v601 = vpop.f32.mrf.mxu0
        %v602 = vadd.f32 0.0, %v601
        %v603 = vpop.f32.mrf.mxu0
        %604 = vmatprep.mubr.f32.mxu0 0.0
        %605 = vmatmul.mubr.f32.gmra.mxu0 %v383
        %v606 = vpop.f32.mrf.mxu0
        %v607 = vadd.f32 0.0, %v606
        %v608 = vpop.f32.mrf.mxu0
        %609 = vdwg.mxu0
        %610 = vmatprep.subr.mxu0 0.0
        %611 = vmatpush1.msra.mxu0 0.0
        %612 = vmatprep.subr.mxu0 0.0
        %613 = vmatpush1.msra.mxu0 0.0
        %614 = vmatprep.subr.mxu0 0.0
        %615 = vmatpush1.msra.mxu0 0.0
        %616 = vmatprep.subr.mxu0 0.0
        %617 = vmatpush1.msra.mxu0 0.0
        %618 = vmatprep.subr.mxu0 0.0
        %619 = vmatpush1.msra.mxu0 0.0
        %620 = vmatprep.subr.mxu0 0.0
        %621 = vmatpush1.msra.mxu0 0.0
        %622 = vmatprep.subr.mxu0 0.0
        %623 = vmatpush1.msra.mxu0 0.0
        %624 = vmatprep.subr.mxu0 0.0
        %625 = vmatpush1.msra.mxu0 0.0
        %626 = vmatprep.subr.mxu0 0.0
        %627 = vmatpush1.msra.mxu0 0.0
        %628 = vmatprep.subr.mxu0 0.0
        %629 = vmatpush1.msra.mxu0 0.0
        %630 = vmatprep.subr.mxu0 0.0
        %631 = vmatpush1.msra.mxu0 0.0
        %632 = vmatprep.subr.mxu0 0.0
        %633 = vmatpush1.msra.mxu0 0.0
        %634 = vmatprep.subr.mxu0 0.0
        %635 = vmatpush1.msra.mxu0 0.0
        %636 = vmatprep.subr.mxu0 0.0
        %637 = vmatpush1.msra.mxu0 0.0
        %638 = vmatprep.subr.mxu0 0.0
        %639 = vmatpush1.msra.mxu0 0.0
        %640 = vmatprep.subr.mxu0 0.0
        %641 = vmatpush1.msra.mxu0 %v375
        %642 = vmatprep.subr.mxu0 0.0
        %643 = vmatpush2.msra.mxu0 0.0
        %644 = vmatprep.subr.mxu0 0.0
        %645 = vmatpush2.msra.mxu0 0.0
        %646 = vmatprep.subr.mxu0 0.0
        %647 = vmatpush2.msra.mxu0 0.0
        %648 = vmatprep.subr.mxu0 0.0
        %649 = vmatpush2.msra.mxu0 0.0
        %650 = vmatprep.subr.mxu0 0.0
        %651 = vmatpush2.msra.mxu0 0.0
        %652 = vmatprep.subr.mxu0 0.0
        %653 = vmatpush2.msra.mxu0 0.0
        %654 = vmatprep.subr.mxu0 0.0
        %655 = vmatpush2.msra.mxu0 0.0
        %656 = vmatprep.subr.mxu0 0.0
        %657 = vmatpush2.msra.mxu0 0.0
        %658 = vmatprep.subr.mxu0 0.0
        %659 = vmatpush2.msra.mxu0 0.0
        %660 = vmatprep.subr.mxu0 0.0
        %661 = vmatpush2.msra.mxu0 0.0
        %662 = vmatprep.subr.mxu0 0.0
        %663 = vmatpush2.msra.mxu0 0.0
        %664 = vmatprep.subr.mxu0 0.0
        %665 = vmatpush2.msra.mxu0 0.0
        %666 = vmatprep.subr.mxu0 0.0
        %667 = vmatpush2.msra.mxu0 0.0
        %668 = vmatprep.subr.mxu0 0.0
        %669 = vmatpush2.msra.mxu0 0.0
        %670 = vmatprep.subr.mxu0 0.0
        %671 = vmatpush2.msra.mxu0 0.0
        %672 = vmatprep.subr.mxu0 0.0
        %673 = vmatpush2.msra.mxu0 0.0
        %674 = vmatprep.mubr.f32.mxu0 0.0
        %675 = vmatmul.mubr.f32.gmra.mxu0 %v380
        %v676 = vpop.f32.mrf.mxu0
        %v677 = vadd.f32 0.0, %v676
        %v678 = vpop.f32.mrf.mxu0
        %679 = vmatprep.mubr.f32.mxu0 0.0
        %680 = vmatmul.mubr.f32.gmra.mxu0 %v383
        %v681 = vpop.f32.mrf.mxu0
        %v682 = vadd.f32 0.0, %v681
        %v683 = vpop.f32.mrf.mxu0
        %684 = vdwg.mxu0
        %v685 = vld [vmem:[%s4] sm:$0xff]
        %v687 = vsel %vm378, %v452, 0
        %v690 = vsel %vm378, %v457, 0
        %v693 = vsel %vm378, %v527, 0
        %v696 = vsel %vm378, %v532, 0
        %v699 = vsel %vm378, %v602, 0
        %v702 = vsel %vm378, %v607, 0
        %v705 = vsel %vm378, %v677, 0
        %v708 = vsel %vm378, %v682, 0
        %710 = vmatprep.subr.mxu0 0.0
        %711 = vmatpush1.msra.mxu0 0.0
        %712 = vmatprep.subr.mxu0 0.0
        %713 = vmatpush1.msra.mxu0 0.0
        %714 = vmatprep.subr.mxu0 0.0
        %715 = vmatpush1.msra.mxu0 0.0
        %716 = vmatprep.subr.mxu0 0.0
        %717 = vmatpush1.msra.mxu0 0.0
        %718 = vmatprep.subr.mxu0 0.0
        %719 = vmatpush1.msra.mxu0 0.0
        %720 = vmatprep.subr.mxu0 0.0
        %721 = vmatpush1.msra.mxu0 0.0
        %722 = vmatprep.subr.mxu0 0.0
        %723 = vmatpush1.msra.mxu0 0.0
        %724 = vmatprep.subr.mxu0 0.0
        %725 = vmatpush1.msra.mxu0 0.0
        %726 = vmatprep.subr.mxu0 0.0
        %727 = vmatpush1.msra.mxu0 0.0
        %728 = vmatprep.subr.mxu0 0.0
        %729 = vmatpush1.msra.mxu0 0.0
        %730 = vmatprep.subr.mxu0 0.0
        %731 = vmatpush1.msra.mxu0 0.0
        %732 = vmatprep.subr.mxu0 0.0
        %733 = vmatpush1.msra.mxu0 0.0
        %734 = vmatprep.subr.mxu0 0.0
        %735 = vmatpush1.msra.mxu0 0.0
        %736 = vmatprep.subr.mxu0 0.0
        %737 = vmatpush1.msra.mxu0 0.0
        %738 = vmatprep.subr.mxu0 0.0
        %739 = vmatpush1.msra.mxu0 0.0
        %740 = vmatprep.subr.mxu0 0.0
        %741 = vmatpush1.msra.mxu0 %v685
        %742 = vmatprep.subr.mxu0 0.0
        %743 = vmatpush2.msra.mxu0 0.0
        %744 = vmatprep.subr.mxu0 0.0
        %745 = vmatpush2.msra.mxu0 0.0
        %746 = vmatprep.subr.mxu0 0.0
        %747 = vmatpush2.msra.mxu0 0.0
        %748 = vmatprep.subr.mxu0 0.0
        %749 = vmatpush2.msra.mxu0 0.0
        %750 = vmatprep.subr.mxu0 0.0
        %751 = vmatpush2.msra.mxu0 0.0
        %752 = vmatprep.subr.mxu0 0.0
        %753 = vmatpush2.msra.mxu0 0.0
        %754 = vmatprep.subr.mxu0 0.0
        %755 = vmatpush2.msra.mxu0 0.0
        %756 = vmatprep.subr.mxu0 0.0
        %757 = vmatpush2.msra.mxu0 0.0
        %758 = vmatprep.subr.mxu0 0.0
        %759 = vmatpush2.msra.mxu0 0.0
        %760 = vmatprep.subr.mxu0 0.0
        %761 = vmatpush2.msra.mxu0 0.0
        %762 = vmatprep.subr.mxu0 0.0
        %763 = vmatpush2.msra.mxu0 0.0
        %764 = vmatprep.subr.mxu0 0.0
        %765 = vmatpush2.msra.mxu0 0.0
        %766 = vmatprep.subr.mxu0 0.0
        %767 = vmatpush2.msra.mxu0 0.0
        %768 = vmatprep.subr.mxu0 0.0
        %769 = vmatpush2.msra.mxu0 0.0
        %770 = vmatprep.subr.mxu0 0.0
        %771 = vmatpush2.msra.mxu0 0.0
        %772 = vmatprep.subr.mxu0 0.0
        %773 = vmatpush2.msra.mxu0 0.0
        %774 = vmatprep.mubr.f32.mxu0 0.0
        %775 = vmatmul.mubr.f32.gmra.mxu0 %v687
        %v776 = vpop.f32.mrf.mxu0
        %v777 = vadd.f32 0.0, %v776
        %v778 = vpop.f32.mrf.mxu0
        %779 = vmatprep.mubr.f32.mxu0 0.0
        %780 = vmatmul.mubr.f32.gmra.mxu0 %v690
        %v781 = vpop.f32.mrf.mxu0
        %v782 = vadd.f32 0.0, %v781
        %v783 = vpop.f32.mrf.mxu0
        %784 = vmatprep.mubr.f32.mxu0 0.0
        %785 = vmatmul.mubr.f32.gmra.mxu0 %v693
        %v786 = vpop.f32.mrf.mxu0
        %v787 = vadd.f32 0.0, %v786
        %v788 = vpop.f32.mrf.mxu0
        %789 = vmatprep.mubr.f32.mxu0 0.0
        %790 = vmatmul.mubr.f32.gmra.mxu0 %v696
        %v791 = vpop.f32.mrf.mxu0
        %v792 = vadd.f32 0.0, %v791
        %v793 = vpop.f32.mrf.mxu0
        %794 = vmatprep.mubr.f32.mxu0 0.0
        %795 = vmatmul.mubr.f32.gmra.mxu0 %v699
        %v796 = vpop.f32.mrf.mxu0
        %v797 = vadd.f32 0.0, %v796
        %v798 = vpop.f32.mrf.mxu0
        %799 = vmatprep.mubr.f32.mxu0 0.0
        %800 = vmatmul.mubr.f32.gmra.mxu0 %v702
        %v801 = vpop.f32.mrf.mxu0
        %v802 = vadd.f32 0.0, %v801
        %v803 = vpop.f32.mrf.mxu0
        %804 = vmatprep.mubr.f32.mxu0 0.0
        %805 = vmatmul.mubr.f32.gmra.mxu0 %v705
        %v806 = vpop.f32.mrf.mxu0
        %v807 = vadd.f32 0.0, %v806
        %v808 = vpop.f32.mrf.mxu0
        %809 = vmatprep.mubr.f32.mxu0 0.0
        %810 = vmatmul.mubr.f32.gmra.mxu0 %v708
        %v811 = vpop.f32.mrf.mxu0
        %v812 = vadd.f32 0.0, %v811
        %v813 = vpop.f32.mrf.mxu0
        %814 = vdwg.mxu0
        %s815 = smul.f32 %s339, %s344
        %v816 = vstv %s815
        %v817 = vmul.f32 %v816, %v777
        %v818 = vmul.f32 %v816, %v782
        %v819 = vmul.f32 %v816, %v787
        %v820 = vmul.f32 %v816, %v792
        %v821 = vmul.f32 %v816, %v797
        %v822 = vmul.f32 %v816, %v802
        %v823 = vmul.f32 %v816, %v807
        %v824 = vmul.f32 %v816, %v812
        %s825 = scalar_lea.vmem %s332, 64 [#allocation10]
        %826 = vst.msk [vmem:[%s825] sm:$0xff] %vm363, %v817
        %827 = vst.msk [vmem:[%s825 + $0x8] sm:$0xff] %vm363, %v818
        %828 = vst.msk [vmem:[%s825 + $0x10] sm:$0xff] %vm363, %v819
        %829 = vst.msk [vmem:[%s825 + $0x18] sm:$0xff] %vm363, %v820
        %830 = vst.msk [vmem:[%s825 + $0x20] sm:$0xff] %vm363, %v821
        %831 = vst.msk [vmem:[%s825 + $0x28] sm:$0xff] %vm363, %v822
        %832 = vst.msk [vmem:[%s825 + $0x30] sm:$0xff] %vm363, %v823
        %833 = vst.msk [vmem:[%s825 + $0x38] sm:$0xff] %vm363, %v824
        %s834 = sand.u32 %s167, 1
        %s835 = scalar_lea.sflag [#allocation4], %s834
        %s836 = sand.u32 %s167, 1
        %s837 = smul.addr %s836, 128
        %s838 = scalar_lea.vmem [#allocation10], %s837
        // Predicated region
        $region57: #{bifpn_concat.1} parent=39 // pred_check
          %p839 = pneg %p177
        $region58: #{bifpn_concat.1} parent=39 // pred_check_branch
          %841 = sbr.rel (%p839) target = $region60
        $region59: #{bifpn_concat.1} parent=39 // pred_region
          %s842 = smul.u32 8, %s31
          %s844 = ssub.s32 2048, 2048
          %845 = vsyncadd %s835, %s844
          %s846 = smul.addr %s30, 16
          %s847 = sadd.s32 %s842, %s846
          %s848 = smul.addr %s847, 128
          %s849 = scalar_lea.hbm %s5, %s848
          %s850 = sshll.u32 %s838, 4
          %s851 = int_to_ptr.vmem [resolvable:$true] %s850
          %856 = dma.vmem_to_hbm [thread:$0]  %s851, 2048, %s849, %s835, 128, 128, 8
        $region60: #{bifpn_concat.1} parent=39 // pred_fallthru
          _
      $region40: #{bifpn_concat.1} parent=5 // pred_fallthru
        _
      %p857 = scmp.le.s32.totalorder 2, %s21
      // Predicated region
      $region61: #{bifpn_concat.1} parent=5 // pred_check
        %p858 = pneg %p857
      $region62: #{bifpn_concat.1} parent=5 // pred_check_branch
        %860 = sbr.rel (%p858) target = $region64
      $region63: #{bifpn_concat.1} parent=5 // pred_region
        %s861 = ssub.s32 %s21, 2
        // Predicated region
        $region65: #{bifpn_concat.1} parent=63 // pred_check
          %p862 = pneg %p183
        $region66: #{bifpn_concat.1} parent=63 // pred_check_branch
          %864 = sbr.rel (%p862) target = $region68
        $region67: #{bifpn_concat.1} parent=63 // pred_region
          %s865 = sand.u32 %s168, 1
          %s866 = scalar_lea.sflag [#allocation4], %s865
          %s867 = sand.u32 %s168, 1
          %s868 = smul.addr %s867, 128
          %s869 = scalar_lea.vmem [#allocation10], %s868
          %870 = dma.done %s866, 2048
        $region68: #{bifpn_concat.1} parent=63 // pred_fallthru
          _
      $region64: #{bifpn_concat.1} parent=5 // pred_fallthru
        _
    $region6: #{bifpn_concat.1} parent=1 // loop_footer
      %s25 = sadd.s32 1, %s21
    $region7: #{bifpn_concat.1} parent=1 // loop_footer_branch
      %20 = sbr.rel target = $region3
    $region8: #{bifpn_concat.1} parent=1 // loop_exit
      _
    %871 = vsyncpa [#allocation3], 1
    %s872 = scalar_lea.sflag [#allocation3], 1
    %873 = vsyncpa %s872, 1
    %874 = vsyncpa [#allocation8], 1
    %s875 = scalar_lea.sflag [#allocation8], 1
    %876 = vsyncpa %s875, 1
    %877 = vsyncpa [#allocation4], 1
    %s878 = scalar_lea.sflag [#allocation4], 1
    %879 = vsyncpa %s878, 1
    %880 = vsyncpa [#allocation5], 1
    %s881 = scalar_lea.sflag [#allocation5], 1
    %882 = vsyncpa %s881, 1

</llo_original>
